<compile_context>
chip_gen: v7x
topology: tpu7x:2x2x1
jax: 0.10.0
libtpu: 0.0.40
codegen_flags: <defaults>
</compile_context>

<pallas_src>
import functools

import jax
import jax.numpy as jnp
from jax.experimental import pallas as pl
from jax.experimental.pallas import tpu as pltpu

IN_FEATURES = 9
HIDDEN = 1000
OUT_FEATURES = 2

K_PAD = 128    # 9    -> 128 (lane-dense x / w1 rows)
H_PAD = 1024   # 1000 -> 1024 (8*128 exact tiling)
O_PAD = 128    # 2    -> 128 (lane-dense w2 cols / output)


def _cdiv(a, b):
    return -(-a // b)


def _round_up(n, m):
    return _cdiv(n, m) * m


def _choose_tiles(B, max_tb):
    """Split the batch into equal 8-aligned tiles; >=2 tiles when B>=16 (v7x dual-TC)."""
    B8 = _round_up(max(B, 1), 8)
    n = _cdiv(B8, max_tb)
    if B8 >= 16:
        n = max(n, 2)
    TB = _round_up(_cdiv(B8, n), 8)
    Bp = n * TB
    return TB, Bp, n


def qnet_kernel(x_ref, w1_ref, b1_ref, w2_ref, b2_ref, out_ref, *, compute_dtype):
    # Hidden layer: (TB, 128) @ (128, 1024) + (1, 1024), ReLU.  (astype is a no-op for f32.)
    x = x_ref[...].astype(compute_dtype)
    w1 = w1_ref[...].astype(compute_dtype)
    h = jnp.dot(x, w1, preferred_element_type=jnp.float32)
    h = jnp.maximum(h + b1_ref[...], 0.0)
    # Output layer: (TB, 1024) @ (1024, 128) + (1, 128); lane-dense store.
    y = jnp.dot(h.astype(compute_dtype), w2_ref[...].astype(compute_dtype),
                preferred_element_type=jnp.float32) + b2_ref[...]
    out_ref[...] = y.astype(out_ref.dtype)


def qnetwork_forward(x, w1p, b1p, w2p, b2p, *, max_tb=1024, use_bf16=False):
    """x: (B, 9) float32. Padded params: w1p (128,1024), b1p (1,1024), w2p (1024,128), b2p (1,128).

    Returns (B, 2) float32. Batch is tiled with a parallel grid; weights stay resident.
    """
    B, K = x.shape
    assert K == IN_FEATURES
    Kp, Hp = w1p.shape
    Op = w2p.shape[1]

    TB, Bp, n = _choose_tiles(B, max_tb)
    # Zero-pad batch rows (sliced off below) and feature lanes 9 -> 128 (exact: zero cols
    # of x meet zero rows of w1p).
    xp = jnp.pad(x, ((0, Bp - B), (0, Kp - K)))

    compute_dtype = jnp.bfloat16 if use_bf16 else jnp.float32

    out = pl.pallas_call(
        functools.partial(qnet_kernel, compute_dtype=compute_dtype),
        out_shape=jax.ShapeDtypeStruct((Bp, Op), jnp.float32),
        grid=(n,),
        in_specs=[
            pl.BlockSpec((TB, Kp), lambda i: (i, 0)),   # x: tiled over batch
            pl.BlockSpec((Kp, Hp), lambda i: (0, 0)),   # w1: resident
            pl.BlockSpec((1, Hp), lambda i: (0, 0)),    # b1: resident
            pl.BlockSpec((Hp, Op), lambda i: (0, 0)),   # w2: resident (lane-dense)
            pl.BlockSpec((1, Op), lambda i: (0, 0)),    # b2: resident
        ],
        out_specs=pl.BlockSpec((TB, Op), lambda i: (i, 0)),  # lane-dense output block
        compiler_params=pltpu.CompilerParams(
            dimension_semantics=("parallel",),
        ),
    )(xp, w1p, b1p, w2p, b2p)
    # Slice off padded batch rows and padded output lanes (padded region is not meaningful).
    return out[:B, :OUT_FEATURES]


def init_params(key):
    """Deterministic synthetic init mimicking nn.Linear's U(-1/sqrt(fan_in), 1/sqrt(fan_in))."""
    k1, k2, k3, k4 = jax.random.split(key, 4)
    lim1 = 1.0 / jnp.sqrt(IN_FEATURES)
    lim2 = 1.0 / jnp.sqrt(HIDDEN)
    w1 = jax.random.uniform(k1, (IN_FEATURES, HIDDEN), jnp.float32, -lim1, lim1)
    b1 = jax.random.uniform(k2, (1, HIDDEN), jnp.float32, -lim1, lim1)
    w2 = jax.random.uniform(k3, (HIDDEN, OUT_FEATURES), jnp.float32, -lim2, lim2)
    b2 = jax.random.uniform(k4, (1, OUT_FEATURES), jnp.float32, -lim2, lim2)
    return w1, b1, w2, b2


def pad_params(w1, b1, w2, b2):
    """Zero-pad to lane-dense shapes: exact, since padded activations/weights are zero."""
    w1p = jnp.pad(w1, ((0, K_PAD - IN_FEATURES), (0, H_PAD - HIDDEN)))
    b1p = jnp.pad(b1, ((0, 0), (0, H_PAD - HIDDEN)))
    w2p = jnp.pad(w2, ((0, H_PAD - HIDDEN), (0, O_PAD - OUT_FEATURES)))
    b2p = jnp.pad(b2, ((0, 0), (0, O_PAD - OUT_FEATURES)))
    return w1p, b1p, w2p, b2p


def reference_forward(x, w1, b1, w2, b2):
    # Pure-JAX reference of the PyTorch forward (Flatten(-1,-1) is a no-op).
    h = jnp.maximum(x @ w1 + b1, 0.0)
    return h @ w2 + b2


if __name__ == "__main__":
    key = jax.random.PRNGKey(0)
    kx, kx2, kp = jax.random.split(key, 3)
    w1, b1, w2, b2 = init_params(kp)
    w1p, b1p, w2p, b2p = pad_params(w1, b1, w2, b2)

    # Small batch: single grid step.
    B = 8
    x = jax.random.normal(kx, (B, IN_FEATURES), jnp.float32)
    out = jax.block_until_ready(qnetwork_forward(x, w1p, b1p, w2p, b2p))
    ref = reference_forward(x, w1, b1, w2, b2)
    assert out.shape == (B, OUT_FEATURES)
    assert jnp.allclose(out, ref, atol=1e-4, rtol=1e-4), "mismatch vs reference (B=8)"

    # Slightly larger batch: exercises multi-tile parallel grid + batch-row padding.
    B2 = 24
    x2 = jax.random.normal(kx2, (B2, IN_FEATURES), jnp.float32)
    out2 = jax.block_until_ready(qnetwork_forward(x2, w1p, b1p, w2p, b2p))
    ref2 = reference_forward(x2, w1, b1, w2, b2)
    assert out2.shape == (B2, OUT_FEATURES)
    assert jnp.allclose(out2, ref2, atol=1e-4, rtol=1e-4), "mismatch vs reference (B=24)"

    print("KERNEL_OK")
</pallas_src>

<mosaic_0001>
module attributes {stable_mosaic.version = 11 : i64} {
  func.func @qnet_kernel(%arg0: i32, %arg1: memref<8x128xf32, #tpu.memory_space<vmem>>, %arg2: memref<128x1024xf32, #tpu.memory_space<vmem>>, %arg3: memref<1x1024xf32, #tpu.memory_space<vmem>>, %arg4: memref<1024x128xf32, #tpu.memory_space<vmem>>, %arg5: memref<1x128xf32, #tpu.memory_space<vmem>>, %arg6: memref<8x128xf32, #tpu.memory_space<vmem>>) attributes {dimension_semantics = [#tpu.dimension_semantics<parallel>], iteration_bounds = array<i64: 1>, scalar_prefetch = 0 : i64, scratch_operands = 0 : i64, tpu.core_type = #tpu.core_type<tc>, window_params = [{transform_indices = @transform_0, window_bounds = array<i64: 8, 128>}, {pipeline_mode = #tpu.pipeline_mode<synchronous>, transform_indices = @transform_1, window_bounds = array<i64: 128, 1024>}, {pipeline_mode = #tpu.pipeline_mode<synchronous>, transform_indices = @transform_2, window_bounds = array<i64: 1, 1024>}, {pipeline_mode = #tpu.pipeline_mode<synchronous>, transform_indices = @transform_3, window_bounds = array<i64: 1024, 128>}, {pipeline_mode = #tpu.pipeline_mode<synchronous>, transform_indices = @transform_4, window_bounds = array<i64: 1, 128>}, {transform_indices = @transform_5, window_bounds = array<i64: 8, 128>}]} {
    %c0 = arith.constant 0 : index
    %c0_0 = arith.constant 0 : index
    %0 = vector.load %arg1[%c0, %c0_0] : memref<8x128xf32, #tpu.memory_space<vmem>>, vector<8x128xf32>
    %c0_1 = arith.constant 0 : index
    %c0_2 = arith.constant 0 : index
    %1 = vector.load %arg2[%c0_1, %c0_2] : memref<128x1024xf32, #tpu.memory_space<vmem>>, vector<128x1024xf32>
    %cst = arith.constant dense<0.000000e+00> : vector<8x1024xf32>
    %2 = tpu.matmul %0, %1, %cst {dimension_numbers = #tpu.dot_dimension_numbers<[1], [0], [0], [1], [0, 0, 1, 1], [], []>} : vector<8x128xf32>, vector<128x1024xf32>, vector<8x1024xf32> -> vector<8x1024xf32>
    %c0_3 = arith.constant 0 : index
    %c0_4 = arith.constant 0 : index
    %3 = vector.load %arg3[%c0_3, %c0_4] : memref<1x1024xf32, #tpu.memory_space<vmem>>, vector<1x1024xf32>
    %4 = vector.broadcast %3 : vector<1x1024xf32> to vector<8x1024xf32>
    %5 = arith.addf %2, %4 : vector<8x1024xf32>
    %cst_5 = arith.constant 0.000000e+00 : f32
    %6 = vector.broadcast %cst_5 : f32 to vector<8x1024xf32>
    %7 = arith.maximumf %5, %6 : vector<8x1024xf32>
    %c0_6 = arith.constant 0 : index
    %c0_7 = arith.constant 0 : index
    %8 = vector.load %arg4[%c0_6, %c0_7] : memref<1024x128xf32, #tpu.memory_space<vmem>>, vector<1024x128xf32>
    %cst_8 = arith.constant dense<0.000000e+00> : vector<8x128xf32>
    %9 = tpu.matmul %7, %8, %cst_8 {dimension_numbers = #tpu.dot_dimension_numbers<[1], [0], [0], [1], [0, 0, 1, 1], [], []>} : vector<8x1024xf32>, vector<1024x128xf32>, vector<8x128xf32> -> vector<8x128xf32>
    %c0_9 = arith.constant 0 : index
    %c0_10 = arith.constant 0 : index
    %10 = vector.load %arg5[%c0_9, %c0_10] : memref<1x128xf32, #tpu.memory_space<vmem>>, vector<1x128xf32>
    %11 = vector.broadcast %10 : vector<1x128xf32> to vector<8x128xf32>
    %12 = arith.addf %9, %11 : vector<8x128xf32>
    %c0_11 = arith.constant 0 : index
    %c0_12 = arith.constant 0 : index
    %13 = vector.load %arg6[%c0_11, %c0_12] : memref<8x128xf32, #tpu.memory_space<vmem>>, vector<8x128xf32>
    tpu.vector_store %arg6[%c0_11, %c0_12], %12 {strides = array<i32>} : memref<8x128xf32, #tpu.memory_space<vmem>>, vector<8x128xf32>,
    return
  }
  func.func @transform_0(%arg0: i32) -> (i32, i32) {
    %c0_i32 = arith.constant 0 : i32
    %c0_i32_0 = arith.constant 0 : i32
    return %arg0, %c0_i32 : i32, i32
  }
  func.func @transform_1(%arg0: i32) -> (i32, i32) {
    %c0_i32 = arith.constant 0 : i32
    %c0_i32_0 = arith.constant 0 : i32
    %c0_i32_1 = arith.constant 0 : i32
    return %c0_i32, %c0_i32_0 : i32, i32
  }
  func.func @transform_2(%arg0: i32) -> (i32, i32) {
    %c0_i32 = arith.constant 0 : i32
    %c0_i32_0 = arith.constant 0 : i32
    %c0_i32_1 = arith.constant 0 : i32
    return %c0_i32, %c0_i32_0 : i32, i32
  }
  func.func @transform_3(%arg0: i32) -> (i32, i32) {
    %c0_i32 = arith.constant 0 : i32
    %c0_i32_0 = arith.constant 0 : i32
    %c0_i32_1 = arith.constant 0 : i32
    return %c0_i32, %c0_i32_0 : i32, i32
  }
  func.func @transform_4(%arg0: i32) -> (i32, i32) {
    %c0_i32 = arith.constant 0 : i32
    %c0_i32_0 = arith.constant 0 : i32
    %c0_i32_1 = arith.constant 0 : i32
    return %c0_i32, %c0_i32_0 : i32, i32
  }
  func.func @transform_5(%arg0: i32) -> (i32, i32) {
    %c0_i32 = arith.constant 0 : i32
    %c0_i32_0 = arith.constant 0 : i32
    return %arg0, %c0_i32 : i32, i32
  }
}

</mosaic_0001>

<llo_original>
// kernel: tpu_custom_call.1
$region0: #{tpu_custom_call.1}
  #allocation0 [shape = 'u32[]', space=smem, size = 0x4, offset = 0x4, fixed_abs, tag = 'smem constant byte address 0x4 - core index']
  #allocation1 [shape = 'u32[144,128]{1,0:T(1,128)}', space=vmem, size = 0x12000, scoped, tag = 'internal scratch']
  %s0 = inlined_call_operand.hbm [shape: f32[8,128], index: 0, kind: input, shape index: {}]
  %s1 = inlined_call_operand.hbm [shape: f32[128,1024], index: 1, kind: input, shape index: {}]
  %s2 = inlined_call_operand.hbm [shape: f32[1,1024], index: 2, kind: input, shape index: {}]
  %s3 = inlined_call_operand.hbm [shape: f32[1024,128], index: 3, kind: input, shape index: {}]
  %s4 = inlined_call_operand.vmem [shape: f32[1,128], index: 4, kind: input, shape index: {}]
  %s5 = inlined_call_operand.hbm [shape: f32[8,128], index: 5, kind: output, shape index: {}]
  %s6 = sld [smem:[#allocation0]]
  $region46: #{tpu_custom_call.1} parent=0
    _
  %s8 = ssub.s32 1, %s6
  %s9 = scalar_select 0, %s8, %s6
  $region1: #{tpu_custom_call.1} parent=0
    #allocation2 [shape = 'u8[4096]{0}', space=vmem, size = 0x1000, scoped, tag = 'input window, operand 0, single buffered']
    #allocation3 [shape = 's32[1]{0}', space=sflag, size = 0x4, scoped, tag = 'scoped memory for tpu_custom_call.1']
    #allocation4 [shape = 's32[1]{0}', space=sflag, size = 0x4, scoped, tag = 'scoped memory for tpu_custom_call.1']
    #allocation5 [shape = 'u8[524288]{0}', space=vmem, size = 0x80000, scoped, tag = 'input window, operand 1, single buffered']
    #allocation6 [shape = 's32[1]{0}', space=sflag, size = 0x4, scoped, tag = 'scoped memory for tpu_custom_call.1']
    #allocation7 [shape = 'u8[4096]{0}', space=vmem, size = 0x1000, scoped, tag = 'input window, operand 2, single buffered']
    #allocation8 [shape = 'u8[524288]{0}', space=vmem, size = 0x80000, scoped, tag = 'input window, operand 3, single buffered']
    #allocation9 [shape = 's32[1]{0}', space=sflag, size = 0x4, scoped, tag = 'scoped memory for tpu_custom_call.1']
    #allocation10 [shape = 'u8[4096]{0}', space=vmem, size = 0x1000, scoped, tag = 'output window, operand 0, single buffered']
    %10 = vsyncpa [#allocation3], 0
    %11 = vsyncpa [#allocation6], 0
    %12 = vsyncpa [#allocation9], 0
    %13 = vsyncpa [#allocation4], 0
    // Predicated region
    $region2: #{tpu_custom_call.1} parent=1 // pred_check
      _
    $region3: #{tpu_custom_call.1} parent=1 // pred_check_branch
      %15 = sbr.rel (0) target = $region5
    $region4: #{tpu_custom_call.1} parent=1 // pred_region
      %s17 = ssub.s32 128, 128
      %18 = vsyncadd [#allocation3], %s17
      %s20 = sshll.u32 [#allocation2], 4
      %s21 = int_to_ptr.vmem [resolvable:$true] %s20
      %23 = dma.hbm_to_vmem [thread:$0]  %s0, 128, %s21, [#allocation3]
    $region5: #{tpu_custom_call.1} parent=1 // pred_fallthru
      _
    // Predicated region
    $region6: #{tpu_custom_call.1} parent=1 // pred_check
      _
    $region7: #{tpu_custom_call.1} parent=1 // pred_check_branch
      %25 = sbr.rel (0) target = $region9
    $region8: #{tpu_custom_call.1} parent=1 // pred_region
      %s27 = ssub.s32 16384, 16384
      %28 = vsyncadd [#allocation6], %s27
      %s29 = sshll.u32 [#allocation5], 4
      %s30 = int_to_ptr.vmem [resolvable:$true] %s29
      %35 = dma.hbm_to_vmem [thread:$0]  %s1, 16384, %s30, [#allocation6], 1024, 1024, 64
    $region9: #{tpu_custom_call.1} parent=1 // pred_fallthru
      _
    // Predicated region
    $region10: #{tpu_custom_call.1} parent=1 // pred_check
      _
    $region11: #{tpu_custom_call.1} parent=1 // pred_check_branch
      %37 = sbr.rel (0) target = $region13
    $region12: #{tpu_custom_call.1} parent=1 // pred_region
      %s39 = ssub.s32 128, 128
      %40 = vsyncadd [#allocation6], %s39
      %s42 = sshll.u32 [#allocation7], 4
      %s43 = int_to_ptr.vmem [resolvable:$true] %s42
      %45 = dma.hbm_to_vmem [thread:$0]  %s2, 128, %s43, [#allocation6]
    $region13: #{tpu_custom_call.1} parent=1 // pred_fallthru
      _
    // Predicated region
    $region14: #{tpu_custom_call.1} parent=1 // pred_check
      _
    $region15: #{tpu_custom_call.1} parent=1 // pred_check_branch
      %47 = sbr.rel (0) target = $region17
    $region16: #{tpu_custom_call.1} parent=1 // pred_region
      %s49 = ssub.s32 16384, 16384
      %50 = vsyncadd [#allocation9], %s49
      %s51 = sshll.u32 [#allocation8], 4
      %s52 = int_to_ptr.vmem [resolvable:$true] %s51
      %57 = dma.hbm_to_vmem [thread:$0]  %s3, 16384, %s52, [#allocation9], 128, 128, 8
    $region17: #{tpu_custom_call.1} parent=1 // pred_fallthru
      _
    // Predicated region
    $region18: #{tpu_custom_call.1} parent=1 // pred_check
      _
    $region19: #{tpu_custom_call.1} parent=1 // pred_check_branch
      %59 = sbr.rel (0) target = $region21
    $region20: #{tpu_custom_call.1} parent=1 // pred_region
      _
    $region21: #{tpu_custom_call.1} parent=1 // pred_fallthru
      _
    // Predicated region
    $region22: #{tpu_custom_call.1} parent=1 // pred_check
      _
    $region23: #{tpu_custom_call.1} parent=1 // pred_check_branch
      %61 = sbr.rel (0) target = $region25
    $region24: #{tpu_custom_call.1} parent=1 // pred_region
      %62 = dma.done [#allocation3], 128
    $region25: #{tpu_custom_call.1} parent=1 // pred_fallthru
      _
    // Predicated region
    $region26: #{tpu_custom_call.1} parent=1 // pred_check
      _
    $region27: #{tpu_custom_call.1} parent=1 // pred_check_branch
      %64 = sbr.rel (0) target = $region29
    $region28: #{tpu_custom_call.1} parent=1 // pred_region
      %65 = dma.done [#allocation6], 16384
    $region29: #{tpu_custom_call.1} parent=1 // pred_fallthru
      _
    // Predicated region
    $region30: #{tpu_custom_call.1} parent=1 // pred_check
      _
    $region31: #{tpu_custom_call.1} parent=1 // pred_check_branch
      %67 = sbr.rel (0) target = $region33
    $region32: #{tpu_custom_call.1} parent=1 // pred_region
      %68 = dma.done [#allocation6], 128
    $region33: #{tpu_custom_call.1} parent=1 // pred_fallthru
      _
    // Predicated region
    $region34: #{tpu_custom_call.1} parent=1 // pred_check
      _
    $region35: #{tpu_custom_call.1} parent=1 // pred_check_branch
      %70 = sbr.rel (0) target = $region37
    $region36: #{tpu_custom_call.1} parent=1 // pred_region
      %71 = dma.done [#allocation9], 16384
    $region37: #{tpu_custom_call.1} parent=1 // pred_fallthru
      _
    %v72 = vld [vmem:[#allocation2] sm:$0xff]
    %v73 = vld [vmem:[#allocation5] sm:$0xff]
    %v74 = vld [vmem:[#allocation5 + $0x8] sm:$0xff]
    %v75 = vld [vmem:[#allocation5 + $0x10] sm:$0xff]
    %v76 = vld [vmem:[#allocation5 + $0x18] sm:$0xff]
    %v77 = vld [vmem:[#allocation5 + $0x20] sm:$0xff]
    %v78 = vld [vmem:[#allocation5 + $0x28] sm:$0xff]
    %v79 = vld [vmem:[#allocation5 + $0x30] sm:$0xff]
    %v80 = vld [vmem:[#allocation5 + $0x38] sm:$0xff]
    %v81 = vld [vmem:[#allocation5 + $0x40] sm:$0xff]
    %v82 = vld [vmem:[#allocation5 + $0x48] sm:$0xff]
    %v83 = vld [vmem:[#allocation5 + $0x50] sm:$0xff]
    %v84 = vld [vmem:[#allocation5 + $0x58] sm:$0xff]
    %v85 = vld [vmem:[#allocation5 + $0x60] sm:$0xff]
    %v86 = vld [vmem:[#allocation5 + $0x68] sm:$0xff]
    %v87 = vld [vmem:[#allocation5 + $0x70] sm:$0xff]
    %v88 = vld [vmem:[#allocation5 + $0x78] sm:$0xff]
    %v89 = vld [vmem:[#allocation5 + $0x80] sm:$0xff]
    %v90 = vld [vmem:[#allocation5 + $0x88] sm:$0xff]
    %v91 = vld [vmem:[#allocation5 + $0x90] sm:$0xff]
    %v92 = vld [vmem:[#allocation5 + $0x98] sm:$0xff]
    %v93 = vld [vmem:[#allocation5 + $0xa0] sm:$0xff]
    %v94 = vld [vmem:[#allocation5 + $0xa8] sm:$0xff]
    %v95 = vld [vmem:[#allocation5 + $0xb0] sm:$0xff]
    %v96 = vld [vmem:[#allocation5 + $0xb8] sm:$0xff]
    %v97 = vld [vmem:[#allocation5 + $0xc0] sm:$0xff]
    %v98 = vld [vmem:[#allocation5 + $0xc8] sm:$0xff]
    %v99 = vld [vmem:[#allocation5 + $0xd0] sm:$0xff]
    %v100 = vld [vmem:[#allocation5 + $0xd8] sm:$0xff]
    %v101 = vld [vmem:[#allocation5 + $0xe0] sm:$0xff]
    %v102 = vld [vmem:[#allocation5 + $0xe8] sm:$0xff]
    %v103 = vld [vmem:[#allocation5 + $0xf0] sm:$0xff]
    %v104 = vld [vmem:[#allocation5 + $0xf8] sm:$0xff]
    %v105 = vld [vmem:[#allocation5 + $0x100] sm:$0xff]
    %v106 = vld [vmem:[#allocation5 + $0x108] sm:$0xff]
    %v107 = vld [vmem:[#allocation5 + $0x110] sm:$0xff]
    %v108 = vld [vmem:[#allocation5 + $0x118] sm:$0xff]
    %v109 = vld [vmem:[#allocation5 + $0x120] sm:$0xff]
    %v110 = vld [vmem:[#allocation5 + $0x128] sm:$0xff]
    %v111 = vld [vmem:[#allocation5 + $0x130] sm:$0xff]
    %v112 = vld [vmem:[#allocation5 + $0x138] sm:$0xff]
    %v113 = vld [vmem:[#allocation5 + $0x140] sm:$0xff]
    %v114 = vld [vmem:[#allocation5 + $0x148] sm:$0xff]
    %v115 = vld [vmem:[#allocation5 + $0x150] sm:$0xff]
    %v116 = vld [vmem:[#allocation5 + $0x158] sm:$0xff]
    %v117 = vld [vmem:[#allocation5 + $0x160] sm:$0xff]
    %v118 = vld [vmem:[#allocation5 + $0x168] sm:$0xff]
    %v119 = vld [vmem:[#allocation5 + $0x170] sm:$0xff]
    %v120 = vld [vmem:[#allocation5 + $0x178] sm:$0xff]
    %v121 = vld [vmem:[#allocation5 + $0x180] sm:$0xff]
    %v122 = vld [vmem:[#allocation5 + $0x188] sm:$0xff]
    %v123 = vld [vmem:[#allocation5 + $0x190] sm:$0xff]
    %v124 = vld [vmem:[#allocation5 + $0x198] sm:$0xff]
    %v125 = vld [vmem:[#allocation5 + $0x1a0] sm:$0xff]
    %v126 = vld [vmem:[#allocation5 + $0x1a8] sm:$0xff]
    %v127 = vld [vmem:[#allocation5 + $0x1b0] sm:$0xff]
    %v128 = vld [vmem:[#allocation5 + $0x1b8] sm:$0xff]
    %v129 = vld [vmem:[#allocation5 + $0x1c0] sm:$0xff]
    %v130 = vld [vmem:[#allocation5 + $0x1c8] sm:$0xff]
    %v131 = vld [vmem:[#allocation5 + $0x1d0] sm:$0xff]
    %v132 = vld [vmem:[#allocation5 + $0x1d8] sm:$0xff]
    %v133 = vld [vmem:[#allocation5 + $0x1e0] sm:$0xff]
    %v134 = vld [vmem:[#allocation5 + $0x1e8] sm:$0xff]
    %v135 = vld [vmem:[#allocation5 + $0x1f0] sm:$0xff]
    %v136 = vld [vmem:[#allocation5 + $0x1f8] sm:$0xff]
    %v137 = vld [vmem:[#allocation5 + $0x200] sm:$0xff]
    %v138 = vld [vmem:[#allocation5 + $0x208] sm:$0xff]
    %v139 = vld [vmem:[#allocation5 + $0x210] sm:$0xff]
    %v140 = vld [vmem:[#allocation5 + $0x218] sm:$0xff]
    %v141 = vld [vmem:[#allocation5 + $0x220] sm:$0xff]
    %v142 = vld [vmem:[#allocation5 + $0x228] sm:$0xff]
    %v143 = vld [vmem:[#allocation5 + $0x230] sm:$0xff]
    %v144 = vld [vmem:[#allocation5 + $0x238] sm:$0xff]
    %v145 = vld [vmem:[#allocation5 + $0x240] sm:$0xff]
    %v146 = vld [vmem:[#allocation5 + $0x248] sm:$0xff]
    %v147 = vld [vmem:[#allocation5 + $0x250] sm:$0xff]
    %v148 = vld [vmem:[#allocation5 + $0x258] sm:$0xff]
    %v149 = vld [vmem:[#allocation5 + $0x260] sm:$0xff]
    %v150 = vld [vmem:[#allocation5 + $0x268] sm:$0xff]
    %v151 = vld [vmem:[#allocation5 + $0x270] sm:$0xff]
    %v152 = vld [vmem:[#allocation5 + $0x278] sm:$0xff]
    %v153 = vld [vmem:[#allocation5 + $0x280] sm:$0xff]
    %v154 = vld [vmem:[#allocation5 + $0x288] sm:$0xff]
    %v155 = vld [vmem:[#allocation5 + $0x290] sm:$0xff]
    %v156 = vld [vmem:[#allocation5 + $0x298] sm:$0xff]
    %v157 = vld [vmem:[#allocation5 + $0x2a0] sm:$0xff]
    %v158 = vld [vmem:[#allocation5 + $0x2a8] sm:$0xff]
    %v159 = vld [vmem:[#allocation5 + $0x2b0] sm:$0xff]
    %v160 = vld [vmem:[#allocation5 + $0x2b8] sm:$0xff]
    %v161 = vld [vmem:[#allocation5 + $0x2c0] sm:$0xff]
    %v162 = vld [vmem:[#allocation5 + $0x2c8] sm:$0xff]
    %v163 = vld [vmem:[#allocation5 + $0x2d0] sm:$0xff]
    %v164 = vld [vmem:[#allocation5 + $0x2d8] sm:$0xff]
    %v165 = vld [vmem:[#allocation5 + $0x2e0] sm:$0xff]
    %v166 = vld [vmem:[#allocation5 + $0x2e8] sm:$0xff]
    %v167 = vld [vmem:[#allocation5 + $0x2f0] sm:$0xff]
    %v168 = vld [vmem:[#allocation5 + $0x2f8] sm:$0xff]
    %v169 = vld [vmem:[#allocation5 + $0x300] sm:$0xff]
    %v170 = vld [vmem:[#allocation5 + $0x308] sm:$0xff]
    %v171 = vld [vmem:[#allocation5 + $0x310] sm:$0xff]
    %v172 = vld [vmem:[#allocation5 + $0x318] sm:$0xff]
    %v173 = vld [vmem:[#allocation5 + $0x320] sm:$0xff]
    %v174 = vld [vmem:[#allocation5 + $0x328] sm:$0xff]
    %v175 = vld [vmem:[#allocation5 + $0x330] sm:$0xff]
    %v176 = vld [vmem:[#allocation5 + $0x338] sm:$0xff]
    %v177 = vld [vmem:[#allocation5 + $0x340] sm:$0xff]
    %v178 = vld [vmem:[#allocation5 + $0x348] sm:$0xff]
    %v179 = vld [vmem:[#allocation5 + $0x350] sm:$0xff]
    %v180 = vld [vmem:[#allocation5 + $0x358] sm:$0xff]
    %v181 = vld [vmem:[#allocation5 + $0x360] sm:$0xff]
    %v182 = vld [vmem:[#allocation5 + $0x368] sm:$0xff]
    %v183 = vld [vmem:[#allocation5 + $0x370] sm:$0xff]
    %v184 = vld [vmem:[#allocation5 + $0x378] sm:$0xff]
    %v185 = vld [vmem:[#allocation5 + $0x380] sm:$0xff]
    %v186 = vld [vmem:[#allocation5 + $0x388] sm:$0xff]
    %v187 = vld [vmem:[#allocation5 + $0x390] sm:$0xff]
    %v188 = vld [vmem:[#allocation5 + $0x398] sm:$0xff]
    %v189 = vld [vmem:[#allocation5 + $0x3a0] sm:$0xff]
    %v190 = vld [vmem:[#allocation5 + $0x3a8] sm:$0xff]
    %v191 = vld [vmem:[#allocation5 + $0x3b0] sm:$0xff]
    %v192 = vld [vmem:[#allocation5 + $0x3b8] sm:$0xff]
    %v193 = vld [vmem:[#allocation5 + $0x3c0] sm:$0xff]
    %v194 = vld [vmem:[#allocation5 + $0x3c8] sm:$0xff]
    %v195 = vld [vmem:[#allocation5 + $0x3d0] sm:$0xff]
    %v196 = vld [vmem:[#allocation5 + $0x3d8] sm:$0xff]
    %v197 = vld [vmem:[#allocation5 + $0x3e0] sm:$0xff]
    %v198 = vld [vmem:[#allocation5 + $0x3e8] sm:$0xff]
    %v199 = vld [vmem:[#allocation5 + $0x3f0] sm:$0xff]
    %v200 = vld [vmem:[#allocation5 + $0x3f8] sm:$0xff]
    %v201 = vld [vmem:[#allocation7] sm:$0xff]
    %v203 = vlaneseq
    %v204 = vshrl.u32 %v203, 7
    %v205 = vsub.s32 0, %v204
    %v206 = vrot.slane %v201, %v205
    %v207 = vlaneseq
    %v208 = vshrl.u32 %v207, 7
    %v209 = vsub.s32 1, %v208
    %v210 = vrot.slane %v201, %v209
    %v211 = vlaneseq
    %v212 = vshrl.u32 %v211, 7
    %v213 = vsub.s32 2, %v212
    %v214 = vrot.slane %v201, %v213
    %v215 = vlaneseq
    %v216 = vshrl.u32 %v215, 7
    %v217 = vsub.s32 3, %v216
    %v218 = vrot.slane %v201, %v217
    %v219 = vlaneseq
    %v220 = vshrl.u32 %v219, 7
    %v221 = vsub.s32 4, %v220
    %v222 = vrot.slane %v201, %v221
    %v223 = vlaneseq
    %v224 = vshrl.u32 %v223, 7
    %v225 = vsub.s32 5, %v224
    %v226 = vrot.slane %v201, %v225
    %v227 = vlaneseq
    %v228 = vshrl.u32 %v227, 7
    %v229 = vsub.s32 6, %v228
    %v230 = vrot.slane %v201, %v229
    %v231 = vlaneseq
    %v232 = vshrl.u32 %v231, 7
    %v233 = vsub.s32 7, %v232
    %v234 = vrot.slane %v201, %v233
    %243 = vmatprep.subr.mxu0 %v74
    %244 = vmatpush1.msra.mxu0 %v73
    %245 = vmatprep.subr.mxu0 %v82
    %246 = vmatpush1.msra.mxu0 %v81
    %247 = vmatprep.subr.mxu0 %v90
    %248 = vmatpush1.msra.mxu0 %v89
    %249 = vmatprep.subr.mxu0 %v98
    %250 = vmatpush1.msra.mxu0 %v97
    %251 = vmatprep.subr.mxu0 %v106
    %252 = vmatpush1.msra.mxu0 %v105
    %253 = vmatprep.subr.mxu0 %v114
    %254 = vmatpush1.msra.mxu0 %v113
    %255 = vmatprep.subr.mxu0 %v122
    %256 = vmatpush1.msra.mxu0 %v121
    %257 = vmatprep.subr.mxu0 %v130
    %258 = vmatpush1.msra.mxu0 %v129
    %259 = vmatprep.subr.mxu0 %v138
    %260 = vmatpush1.msra.mxu0 %v137
    %261 = vmatprep.subr.mxu0 %v146
    %262 = vmatpush1.msra.mxu0 %v145
    %263 = vmatprep.subr.mxu0 %v154
    %264 = vmatpush1.msra.mxu0 %v153
    %265 = vmatprep.subr.mxu0 %v162
    %266 = vmatpush1.msra.mxu0 %v161
    %267 = vmatprep.subr.mxu0 %v170
    %268 = vmatpush1.msra.mxu0 %v169
    %269 = vmatprep.subr.mxu0 %v178
    %270 = vmatpush1.msra.mxu0 %v177
    %271 = vmatprep.subr.mxu0 %v186
    %272 = vmatpush1.msra.mxu0 %v185
    %273 = vmatprep.subr.mxu0 %v194
    %274 = vmatpush1.msra.mxu0 %v193
    %275 = vmatprep.subr.mxu0 0.0
    %276 = vmatpush1.msra.mxu0 0.0
    %277 = vmatprep.subr.mxu0 0.0
    %278 = vmatpush1.msra.mxu0 0.0
    %279 = vmatprep.subr.mxu0 0.0
    %280 = vmatpush1.msra.mxu0 0.0
    %281 = vmatprep.subr.mxu0 0.0
    %282 = vmatpush1.msra.mxu0 0.0
    %283 = vmatprep.subr.mxu0 0.0
    %284 = vmatpush1.msra.mxu0 0.0
    %285 = vmatprep.subr.mxu0 0.0
    %286 = vmatpush1.msra.mxu0 0.0
    %287 = vmatprep.subr.mxu0 0.0
    %288 = vmatpush1.msra.mxu0 0.0
    %289 = vmatprep.subr.mxu0 0.0
    %290 = vmatpush1.msra.mxu0 0.0
    %291 = vmatprep.subr.mxu0 0.0
    %292 = vmatpush1.msra.mxu0 0.0
    %293 = vmatprep.subr.mxu0 0.0
    %294 = vmatpush1.msra.mxu0 0.0
    %295 = vmatprep.subr.mxu0 0.0
    %296 = vmatpush1.msra.mxu0 0.0
    %297 = vmatprep.subr.mxu0 0.0
    %298 = vmatpush1.msra.mxu0 0.0
    %299 = vmatprep.subr.mxu0 0.0
    %300 = vmatpush1.msra.mxu0 0.0
    %301 = vmatprep.subr.mxu0 0.0
    %302 = vmatpush1.msra.mxu0 0.0
    %303 = vmatprep.subr.mxu0 0.0
    %304 = vmatpush1.msra.mxu0 0.0
    %305 = vmatprep.subr.mxu0 0.0
    %306 = vmatpush1.msra.mxu0 0.0
    %307 = vmatprep.mubr.f32.mxu0 0.0
    %308 = vmatmul.mubr.f32.gmra.mrb[0].mxu0 %v72
    %v309 = vpop.f32.mrb[0].mxu0
    %v310 = vadd.f32 %v206, %v309
    %v311 = vpop.f32.mrb[0].mxu0
    %v312 = vadd.f32 %v210, %v311
    %313 = vdwg.mxu0
    %314 = vmatprep.subr.mxu0 %v76
    %315 = vmatpush1.msra.mxu0 %v75
    %316 = vmatprep.subr.mxu0 %v84
    %317 = vmatpush1.msra.mxu0 %v83
    %318 = vmatprep.subr.mxu0 %v92
    %319 = vmatpush1.msra.mxu0 %v91
    %320 = vmatprep.subr.mxu0 %v100
    %321 = vmatpush1.msra.mxu0 %v99
    %322 = vmatprep.subr.mxu0 %v108
    %323 = vmatpush1.msra.mxu0 %v107
    %324 = vmatprep.subr.mxu0 %v116
    %325 = vmatpush1.msra.mxu0 %v115
    %326 = vmatprep.subr.mxu0 %v124
    %327 = vmatpush1.msra.mxu0 %v123
    %328 = vmatprep.subr.mxu0 %v132
    %329 = vmatpush1.msra.mxu0 %v131
    %330 = vmatprep.subr.mxu0 %v140
    %331 = vmatpush1.msra.mxu0 %v139
    %332 = vmatprep.subr.mxu0 %v148
    %333 = vmatpush1.msra.mxu0 %v147
    %334 = vmatprep.subr.mxu0 %v156
    %335 = vmatpush1.msra.mxu0 %v155
    %336 = vmatprep.subr.mxu0 %v164
    %337 = vmatpush1.msra.mxu0 %v163
    %338 = vmatprep.subr.mxu0 %v172
    %339 = vmatpush1.msra.mxu0 %v171
    %340 = vmatprep.subr.mxu0 %v180
    %341 = vmatpush1.msra.mxu0 %v179
    %342 = vmatprep.subr.mxu0 %v188
    %343 = vmatpush1.msra.mxu0 %v187
    %344 = vmatprep.subr.mxu0 %v196
    %345 = vmatpush1.msra.mxu0 %v195
    %346 = vmatprep.subr.mxu0 0.0
    %347 = vmatpush1.msra.mxu0 0.0
    %348 = vmatprep.subr.mxu0 0.0
    %349 = vmatpush1.msra.mxu0 0.0
    %350 = vmatprep.subr.mxu0 0.0
    %351 = vmatpush1.msra.mxu0 0.0
    %352 = vmatprep.subr.mxu0 0.0
    %353 = vmatpush1.msra.mxu0 0.0
    %354 = vmatprep.subr.mxu0 0.0
    %355 = vmatpush1.msra.mxu0 0.0
    %356 = vmatprep.subr.mxu0 0.0
    %357 = vmatpush1.msra.mxu0 0.0
    %358 = vmatprep.subr.mxu0 0.0
    %359 = vmatpush1.msra.mxu0 0.0
    %360 = vmatprep.subr.mxu0 0.0
    %361 = vmatpush1.msra.mxu0 0.0
    %362 = vmatprep.subr.mxu0 0.0
    %363 = vmatpush1.msra.mxu0 0.0
    %364 = vmatprep.subr.mxu0 0.0
    %365 = vmatpush1.msra.mxu0 0.0
    %366 = vmatprep.subr.mxu0 0.0
    %367 = vmatpush1.msra.mxu0 0.0
    %368 = vmatprep.subr.mxu0 0.0
    %369 = vmatpush1.msra.mxu0 0.0
    %370 = vmatprep.subr.mxu0 0.0
    %371 = vmatpush1.msra.mxu0 0.0
    %372 = vmatprep.subr.mxu0 0.0
    %373 = vmatpush1.msra.mxu0 0.0
    %374 = vmatprep.subr.mxu0 0.0
    %375 = vmatpush1.msra.mxu0 0.0
    %376 = vmatprep.subr.mxu0 0.0
    %377 = vmatpush1.msra.mxu0 0.0
    %378 = vmatprep.mubr.f32.mxu0 0.0
    %379 = vmatmul.mubr.f32.gmra.mrb[0].mxu0 %v72
    %v380 = vpop.f32.mrb[0].mxu0
    %v381 = vadd.f32 %v214, %v380
    %v382 = vpop.f32.mrb[0].mxu0
    %v383 = vadd.f32 %v218, %v382
    %384 = vdwg.mxu0
    %385 = vmatprep.subr.mxu0 %v78
    %386 = vmatpush1.msra.mxu0 %v77
    %387 = vmatprep.subr.mxu0 %v86
    %388 = vmatpush1.msra.mxu0 %v85
    %389 = vmatprep.subr.mxu0 %v94
    %390 = vmatpush1.msra.mxu0 %v93
    %391 = vmatprep.subr.mxu0 %v102
    %392 = vmatpush1.msra.mxu0 %v101
    %393 = vmatprep.subr.mxu0 %v110
    %394 = vmatpush1.msra.mxu0 %v109
    %395 = vmatprep.subr.mxu0 %v118
    %396 = vmatpush1.msra.mxu0 %v117
    %397 = vmatprep.subr.mxu0 %v126
    %398 = vmatpush1.msra.mxu0 %v125
    %399 = vmatprep.subr.mxu0 %v134
    %400 = vmatpush1.msra.mxu0 %v133
    %401 = vmatprep.subr.mxu0 %v142
    %402 = vmatpush1.msra.mxu0 %v141
    %403 = vmatprep.subr.mxu0 %v150
    %404 = vmatpush1.msra.mxu0 %v149
    %405 = vmatprep.subr.mxu0 %v158
    %406 = vmatpush1.msra.mxu0 %v157
    %407 = vmatprep.subr.mxu0 %v166
    %408 = vmatpush1.msra.mxu0 %v165
    %409 = vmatprep.subr.mxu0 %v174
    %410 = vmatpush1.msra.mxu0 %v173
    %411 = vmatprep.subr.mxu0 %v182
    %412 = vmatpush1.msra.mxu0 %v181
    %413 = vmatprep.subr.mxu0 %v190
    %414 = vmatpush1.msra.mxu0 %v189
    %415 = vmatprep.subr.mxu0 %v198
    %416 = vmatpush1.msra.mxu0 %v197
    %417 = vmatprep.subr.mxu0 0.0
    %418 = vmatpush1.msra.mxu0 0.0
    %419 = vmatprep.subr.mxu0 0.0
    %420 = vmatpush1.msra.mxu0 0.0
    %421 = vmatprep.subr.mxu0 0.0
    %422 = vmatpush1.msra.mxu0 0.0
    %423 = vmatprep.subr.mxu0 0.0
    %424 = vmatpush1.msra.mxu0 0.0
    %425 = vmatprep.subr.mxu0 0.0
    %426 = vmatpush1.msra.mxu0 0.0
    %427 = vmatprep.subr.mxu0 0.0
    %428 = vmatpush1.msra.mxu0 0.0
    %429 = vmatprep.subr.mxu0 0.0
    %430 = vmatpush1.msra.mxu0 0.0
    %431 = vmatprep.subr.mxu0 0.0
    %432 = vmatpush1.msra.mxu0 0.0
    %433 = vmatprep.subr.mxu0 0.0
    %434 = vmatpush1.msra.mxu0 0.0
    %435 = vmatprep.subr.mxu0 0.0
    %436 = vmatpush1.msra.mxu0 0.0
    %437 = vmatprep.subr.mxu0 0.0
    %438 = vmatpush1.msra.mxu0 0.0
    %439 = vmatprep.subr.mxu0 0.0
    %440 = vmatpush1.msra.mxu0 0.0
    %441 = vmatprep.subr.mxu0 0.0
    %442 = vmatpush1.msra.mxu0 0.0
    %443 = vmatprep.subr.mxu0 0.0
    %444 = vmatpush1.msra.mxu0 0.0
    %445 = vmatprep.subr.mxu0 0.0
    %446 = vmatpush1.msra.mxu0 0.0
    %447 = vmatprep.subr.mxu0 0.0
    %448 = vmatpush1.msra.mxu0 0.0
    %449 = vmatprep.mubr.f32.mxu0 0.0
    %450 = vmatmul.mubr.f32.gmra.mrb[0].mxu0 %v72
    %v451 = vpop.f32.mrb[0].mxu0
    %v452 = vadd.f32 %v222, %v451
    %v453 = vpop.f32.mrb[0].mxu0
    %v454 = vadd.f32 %v226, %v453
    %455 = vdwg.mxu0
    %456 = vmatprep.subr.mxu0 %v80
    %457 = vmatpush1.msra.mxu0 %v79
    %458 = vmatprep.subr.mxu0 %v88
    %459 = vmatpush1.msra.mxu0 %v87
    %460 = vmatprep.subr.mxu0 %v96
    %461 = vmatpush1.msra.mxu0 %v95
    %462 = vmatprep.subr.mxu0 %v104
    %463 = vmatpush1.msra.mxu0 %v103
    %464 = vmatprep.subr.mxu0 %v112
    %465 = vmatpush1.msra.mxu0 %v111
    %466 = vmatprep.subr.mxu0 %v120
    %467 = vmatpush1.msra.mxu0 %v119
    %468 = vmatprep.subr.mxu0 %v128
    %469 = vmatpush1.msra.mxu0 %v127
    %470 = vmatprep.subr.mxu0 %v136
    %471 = vmatpush1.msra.mxu0 %v135
    %472 = vmatprep.subr.mxu0 %v144
    %473 = vmatpush1.msra.mxu0 %v143
    %474 = vmatprep.subr.mxu0 %v152
    %475 = vmatpush1.msra.mxu0 %v151
    %476 = vmatprep.subr.mxu0 %v160
    %477 = vmatpush1.msra.mxu0 %v159
    %478 = vmatprep.subr.mxu0 %v168
    %479 = vmatpush1.msra.mxu0 %v167
    %480 = vmatprep.subr.mxu0 %v176
    %481 = vmatpush1.msra.mxu0 %v175
    %482 = vmatprep.subr.mxu0 %v184
    %483 = vmatpush1.msra.mxu0 %v183
    %484 = vmatprep.subr.mxu0 %v192
    %485 = vmatpush1.msra.mxu0 %v191
    %486 = vmatprep.subr.mxu0 %v200
    %487 = vmatpush1.msra.mxu0 %v199
    %488 = vmatprep.subr.mxu0 0.0
    %489 = vmatpush1.msra.mxu0 0.0
    %490 = vmatprep.subr.mxu0 0.0
    %491 = vmatpush1.msra.mxu0 0.0
    %492 = vmatprep.subr.mxu0 0.0
    %493 = vmatpush1.msra.mxu0 0.0
    %494 = vmatprep.subr.mxu0 0.0
    %495 = vmatpush1.msra.mxu0 0.0
    %496 = vmatprep.subr.mxu0 0.0
    %497 = vmatpush1.msra.mxu0 0.0
    %498 = vmatprep.subr.mxu0 0.0
    %499 = vmatpush1.msra.mxu0 0.0
    %500 = vmatprep.subr.mxu0 0.0
    %501 = vmatpush1.msra.mxu0 0.0
    %502 = vmatprep.subr.mxu0 0.0
    %503 = vmatpush1.msra.mxu0 0.0
    %504 = vmatprep.subr.mxu0 0.0
    %505 = vmatpush1.msra.mxu0 0.0
    %506 = vmatprep.subr.mxu0 0.0
    %507 = vmatpush1.msra.mxu0 0.0
    %508 = vmatprep.subr.mxu0 0.0
    %509 = vmatpush1.msra.mxu0 0.0
    %510 = vmatprep.subr.mxu0 0.0
    %511 = vmatpush1.msra.mxu0 0.0
    %512 = vmatprep.subr.mxu0 0.0
    %513 = vmatpush1.msra.mxu0 0.0
    %514 = vmatprep.subr.mxu0 0.0
    %515 = vmatpush1.msra.mxu0 0.0
    %516 = vmatprep.subr.mxu0 0.0
    %517 = vmatpush1.msra.mxu0 0.0
    %518 = vmatprep.subr.mxu0 0.0
    %519 = vmatpush1.msra.mxu0 0.0
    %520 = vmatprep.mubr.f32.mxu0 0.0
    %521 = vmatmul.mubr.f32.gmra.mrb[0].mxu0 %v72
    %v522 = vpop.f32.mrb[0].mxu0
    %v523 = vadd.f32 %v230, %v522
    %v524 = vpop.f32.mrb[0].mxu0
    %v525 = vadd.f32 %v234, %v524
    %526 = vdwg.mxu0
    %v527 = vmax.f32 %v310, 0.0
    %v528 = vmax.f32 %v312, 0.0
    %v529 = vmax.f32 %v381, 0.0
    %v530 = vmax.f32 %v383, 0.0
    %v531 = vmax.f32 %v452, 0.0
    %v532 = vmax.f32 %v454, 0.0
    %v533 = vmax.f32 %v523, 0.0
    %v534 = vmax.f32 %v525, 0.0
    %v535 = vld [vmem:[#allocation8] sm:$0xff]
    %v536 = vld [vmem:[#allocation8 + $0x8] sm:$0xff]
    %v537 = vld [vmem:[#allocation8 + $0x10] sm:$0xff]
    %v538 = vld [vmem:[#allocation8 + $0x18] sm:$0xff]
    %v539 = vld [vmem:[#allocation8 + $0x20] sm:$0xff]
    %v540 = vld [vmem:[#allocation8 + $0x28] sm:$0xff]
    %v541 = vld [vmem:[#allocation8 + $0x30] sm:$0xff]
    %v542 = vld [vmem:[#allocation8 + $0x38] sm:$0xff]
    %v543 = vld [vmem:[#allocation8 + $0x40] sm:$0xff]
    %v544 = vld [vmem:[#allocation8 + $0x48] sm:$0xff]
    %v545 = vld [vmem:[#allocation8 + $0x50] sm:$0xff]
    %v546 = vld [vmem:[#allocation8 + $0x58] sm:$0xff]
    %v547 = vld [vmem:[#allocation8 + $0x60] sm:$0xff]
    %v548 = vld [vmem:[#allocation8 + $0x68] sm:$0xff]
    %v549 = vld [vmem:[#allocation8 + $0x70] sm:$0xff]
    %v550 = vld [vmem:[#allocation8 + $0x78] sm:$0xff]
    %v551 = vld [vmem:[#allocation8 + $0x80] sm:$0xff]
    %v552 = vld [vmem:[#allocation8 + $0x88] sm:$0xff]
    %v553 = vld [vmem:[#allocation8 + $0x90] sm:$0xff]
    %v554 = vld [vmem:[#allocation8 + $0x98] sm:$0xff]
    %v555 = vld [vmem:[#allocation8 + $0xa0] sm:$0xff]
    %v556 = vld [vmem:[#allocation8 + $0xa8] sm:$0xff]
    %v557 = vld [vmem:[#allocation8 + $0xb0] sm:$0xff]
    %v558 = vld [vmem:[#allocation8 + $0xb8] sm:$0xff]
    %v559 = vld [vmem:[#allocation8 + $0xc0] sm:$0xff]
    %v560 = vld [vmem:[#allocation8 + $0xc8] sm:$0xff]
    %v561 = vld [vmem:[#allocation8 + $0xd0] sm:$0xff]
    %v562 = vld [vmem:[#allocation8 + $0xd8] sm:$0xff]
    %v563 = vld [vmem:[#allocation8 + $0xe0] sm:$0xff]
    %v564 = vld [vmem:[#allocation8 + $0xe8] sm:$0xff]
    %v565 = vld [vmem:[#allocation8 + $0xf0] sm:$0xff]
    %v566 = vld [vmem:[#allocation8 + $0xf8] sm:$0xff]
    %v567 = vld [vmem:[#allocation8 + $0x100] sm:$0xff]
    %v568 = vld [vmem:[#allocation8 + $0x108] sm:$0xff]
    %v569 = vld [vmem:[#allocation8 + $0x110] sm:$0xff]
    %v570 = vld [vmem:[#allocation8 + $0x118] sm:$0xff]
    %v571 = vld [vmem:[#allocation8 + $0x120] sm:$0xff]
    %v572 = vld [vmem:[#allocation8 + $0x128] sm:$0xff]
    %v573 = vld [vmem:[#allocation8 + $0x130] sm:$0xff]
    %v574 = vld [vmem:[#allocation8 + $0x138] sm:$0xff]
    %v575 = vld [vmem:[#allocation8 + $0x140] sm:$0xff]
    %v576 = vld [vmem:[#allocation8 + $0x148] sm:$0xff]
    %v577 = vld [vmem:[#allocation8 + $0x150] sm:$0xff]
    %v578 = vld [vmem:[#allocation8 + $0x158] sm:$0xff]
    %v579 = vld [vmem:[#allocation8 + $0x160] sm:$0xff]
    %v580 = vld [vmem:[#allocation8 + $0x168] sm:$0xff]
    %v581 = vld [vmem:[#allocation8 + $0x170] sm:$0xff]
    %v582 = vld [vmem:[#allocation8 + $0x178] sm:$0xff]
    %v583 = vld [vmem:[#allocation8 + $0x180] sm:$0xff]
    %v584 = vld [vmem:[#allocation8 + $0x188] sm:$0xff]
    %v585 = vld [vmem:[#allocation8 + $0x190] sm:$0xff]
    %v586 = vld [vmem:[#allocation8 + $0x198] sm:$0xff]
    %v587 = vld [vmem:[#allocation8 + $0x1a0] sm:$0xff]
    %v588 = vld [vmem:[#allocation8 + $0x1a8] sm:$0xff]
    %v589 = vld [vmem:[#allocation8 + $0x1b0] sm:$0xff]
    %v590 = vld [vmem:[#allocation8 + $0x1b8] sm:$0xff]
    %v591 = vld [vmem:[#allocation8 + $0x1c0] sm:$0xff]
    %v592 = vld [vmem:[#allocation8 + $0x1c8] sm:$0xff]
    %v593 = vld [vmem:[#allocation8 + $0x1d0] sm:$0xff]
    %v594 = vld [vmem:[#allocation8 + $0x1d8] sm:$0xff]
    %v595 = vld [vmem:[#allocation8 + $0x1e0] sm:$0xff]
    %v596 = vld [vmem:[#allocation8 + $0x1e8] sm:$0xff]
    %v597 = vld [vmem:[#allocation8 + $0x1f0] sm:$0xff]
    %v598 = vld [vmem:[#allocation8 + $0x1f8] sm:$0xff]
    %v599 = vld [vmem:[#allocation8 + $0x200] sm:$0xff]
    %v600 = vld [vmem:[#allocation8 + $0x208] sm:$0xff]
    %v601 = vld [vmem:[#allocation8 + $0x210] sm:$0xff]
    %v602 = vld [vmem:[#allocation8 + $0x218] sm:$0xff]
    %v603 = vld [vmem:[#allocation8 + $0x220] sm:$0xff]
    %v604 = vld [vmem:[#allocation8 + $0x228] sm:$0xff]
    %v605 = vld [vmem:[#allocation8 + $0x230] sm:$0xff]
    %v606 = vld [vmem:[#allocation8 + $0x238] sm:$0xff]
    %v607 = vld [vmem:[#allocation8 + $0x240] sm:$0xff]
    %v608 = vld [vmem:[#allocation8 + $0x248] sm:$0xff]
    %v609 = vld [vmem:[#allocation8 + $0x250] sm:$0xff]
    %v610 = vld [vmem:[#allocation8 + $0x258] sm:$0xff]
    %v611 = vld [vmem:[#allocation8 + $0x260] sm:$0xff]
    %v612 = vld [vmem:[#allocation8 + $0x268] sm:$0xff]
    %v613 = vld [vmem:[#allocation8 + $0x270] sm:$0xff]
    %v614 = vld [vmem:[#allocation8 + $0x278] sm:$0xff]
    %v615 = vld [vmem:[#allocation8 + $0x280] sm:$0xff]
    %v616 = vld [vmem:[#allocation8 + $0x288] sm:$0xff]
    %v617 = vld [vmem:[#allocation8 + $0x290] sm:$0xff]
    %v618 = vld [vmem:[#allocation8 + $0x298] sm:$0xff]
    %v619 = vld [vmem:[#allocation8 + $0x2a0] sm:$0xff]
    %v620 = vld [vmem:[#allocation8 + $0x2a8] sm:$0xff]
    %v621 = vld [vmem:[#allocation8 + $0x2b0] sm:$0xff]
    %v622 = vld [vmem:[#allocation8 + $0x2b8] sm:$0xff]
    %v623 = vld [vmem:[#allocation8 + $0x2c0] sm:$0xff]
    %v624 = vld [vmem:[#allocation8 + $0x2c8] sm:$0xff]
    %v625 = vld [vmem:[#allocation8 + $0x2d0] sm:$0xff]
    %v626 = vld [vmem:[#allocation8 + $0x2d8] sm:$0xff]
    %v627 = vld [vmem:[#allocation8 + $0x2e0] sm:$0xff]
    %v628 = vld [vmem:[#allocation8 + $0x2e8] sm:$0xff]
    %v629 = vld [vmem:[#allocation8 + $0x2f0] sm:$0xff]
    %v630 = vld [vmem:[#allocation8 + $0x2f8] sm:$0xff]
    %v631 = vld [vmem:[#allocation8 + $0x300] sm:$0xff]
    %v632 = vld [vmem:[#allocation8 + $0x308] sm:$0xff]
    %v633 = vld [vmem:[#allocation8 + $0x310] sm:$0xff]
    %v634 = vld [vmem:[#allocation8 + $0x318] sm:$0xff]
    %v635 = vld [vmem:[#allocation8 + $0x320] sm:$0xff]
    %v636 = vld [vmem:[#allocation8 + $0x328] sm:$0xff]
    %v637 = vld [vmem:[#allocation8 + $0x330] sm:$0xff]
    %v638 = vld [vmem:[#allocation8 + $0x338] sm:$0xff]
    %v639 = vld [vmem:[#allocation8 + $0x340] sm:$0xff]
    %v640 = vld [vmem:[#allocation8 + $0x348] sm:$0xff]
    %v641 = vld [vmem:[#allocation8 + $0x350] sm:$0xff]
    %v642 = vld [vmem:[#allocation8 + $0x358] sm:$0xff]
    %v643 = vld [vmem:[#allocation8 + $0x360] sm:$0xff]
    %v644 = vld [vmem:[#allocation8 + $0x368] sm:$0xff]
    %v645 = vld [vmem:[#allocation8 + $0x370] sm:$0xff]
    %v646 = vld [vmem:[#allocation8 + $0x378] sm:$0xff]
    %v647 = vld [vmem:[#allocation8 + $0x380] sm:$0xff]
    %v648 = vld [vmem:[#allocation8 + $0x388] sm:$0xff]
    %v649 = vld [vmem:[#allocation8 + $0x390] sm:$0xff]
    %v650 = vld [vmem:[#allocation8 + $0x398] sm:$0xff]
    %v651 = vld [vmem:[#allocation8 + $0x3a0] sm:$0xff]
    %v652 = vld [vmem:[#allocation8 + $0x3a8] sm:$0xff]
    %v653 = vld [vmem:[#allocation8 + $0x3b0] sm:$0xff]
    %v654 = vld [vmem:[#allocation8 + $0x3b8] sm:$0xff]
    %v655 = vld [vmem:[#allocation8 + $0x3c0] sm:$0xff]
    %v656 = vld [vmem:[#allocation8 + $0x3c8] sm:$0xff]
    %v657 = vld [vmem:[#allocation8 + $0x3d0] sm:$0xff]
    %v658 = vld [vmem:[#allocation8 + $0x3d8] sm:$0xff]
    %v659 = vld [vmem:[#allocation8 + $0x3e0] sm:$0xff]
    %v660 = vld [vmem:[#allocation8 + $0x3e8] sm:$0xff]
    %v661 = vld [vmem:[#allocation8 + $0x3f0] sm:$0xff]
    %v662 = vld [vmem:[#allocation8 + $0x3f8] sm:$0xff]
    %v663 = vld [vmem:[%s4] sm:$0x1]
    %v665 = vlaneseq
    %v666 = vshrl.u32 %v665, 7
    %v667 = vsub.s32 0, %v666
    %v668 = vrot.slane %v663, %v667
    %670 = vmatprep.subr.mxu0 0.0
    %671 = vmatpush1.msra.mxu0 %v535
    %672 = vmatprep.subr.mxu0 0.0
    %673 = vmatpush1.msra.mxu0 %v536
    %674 = vmatprep.subr.mxu0 0.0
    %675 = vmatpush1.msra.mxu0 %v537
    %676 = vmatprep.subr.mxu0 0.0
    %677 = vmatpush1.msra.mxu0 %v538
    %678 = vmatprep.subr.mxu0 0.0
    %679 = vmatpush1.msra.mxu0 %v539
    %680 = vmatprep.subr.mxu0 0.0
    %681 = vmatpush1.msra.mxu0 %v540
    %682 = vmatprep.subr.mxu0 0.0
    %683 = vmatpush1.msra.mxu0 %v541
    %684 = vmatprep.subr.mxu0 0.0
    %685 = vmatpush1.msra.mxu0 %v542
    %686 = vmatprep.subr.mxu0 0.0
    %687 = vmatpush1.msra.mxu0 %v543
    %688 = vmatprep.subr.mxu0 0.0
    %689 = vmatpush1.msra.mxu0 %v544
    %690 = vmatprep.subr.mxu0 0.0
    %691 = vmatpush1.msra.mxu0 %v545
    %692 = vmatprep.subr.mxu0 0.0
    %693 = vmatpush1.msra.mxu0 %v546
    %694 = vmatprep.subr.mxu0 0.0
    %695 = vmatpush1.msra.mxu0 %v547
    %696 = vmatprep.subr.mxu0 0.0
    %697 = vmatpush1.msra.mxu0 %v548
    %698 = vmatprep.subr.mxu0 0.0
    %699 = vmatpush1.msra.mxu0 %v549
    %700 = vmatprep.subr.mxu0 0.0
    %701 = vmatpush1.msra.mxu0 %v550
    %702 = vmatprep.subr.mxu0 0.0
    %703 = vmatpush1.msra.mxu0 %v551
    %704 = vmatprep.subr.mxu0 0.0
    %705 = vmatpush1.msra.mxu0 %v552
    %706 = vmatprep.subr.mxu0 0.0
    %707 = vmatpush1.msra.mxu0 %v553
    %708 = vmatprep.subr.mxu0 0.0
    %709 = vmatpush1.msra.mxu0 %v554
    %710 = vmatprep.subr.mxu0 0.0
    %711 = vmatpush1.msra.mxu0 %v555
    %712 = vmatprep.subr.mxu0 0.0
    %713 = vmatpush1.msra.mxu0 %v556
    %714 = vmatprep.subr.mxu0 0.0
    %715 = vmatpush1.msra.mxu0 %v557
    %716 = vmatprep.subr.mxu0 0.0
    %717 = vmatpush1.msra.mxu0 %v558
    %718 = vmatprep.subr.mxu0 0.0
    %719 = vmatpush1.msra.mxu0 %v559
    %720 = vmatprep.subr.mxu0 0.0
    %721 = vmatpush1.msra.mxu0 %v560
    %722 = vmatprep.subr.mxu0 0.0
    %723 = vmatpush1.msra.mxu0 %v561
    %724 = vmatprep.subr.mxu0 0.0
    %725 = vmatpush1.msra.mxu0 %v562
    %726 = vmatprep.subr.mxu0 0.0
    %727 = vmatpush1.msra.mxu0 %v563
    %728 = vmatprep.subr.mxu0 0.0
    %729 = vmatpush1.msra.mxu0 %v564
    %730 = vmatprep.subr.mxu0 0.0
    %731 = vmatpush1.msra.mxu0 %v565
    %732 = vmatprep.subr.mxu0 0.0
    %733 = vmatpush1.msra.mxu0 %v566
    %734 = vmatprep.mubr.f32.mxu0 %v528
    %735 = vmatmul.mubr.f32.gmra.mrb[0].mxu0 %v527
    %v736 = vpop.f32.mrb[0].mxu0
    %v737 = vadd.f32 %v668, %v736
    %v738 = vpop.f32.mrb[0].mxu0
    %739 = vdwg.mxu0
    %740 = vmatprep.subr.mxu0 0.0
    %741 = vmatpush1.msra.mxu0 %v567
    %742 = vmatprep.subr.mxu0 0.0
    %743 = vmatpush1.msra.mxu0 %v568
    %744 = vmatprep.subr.mxu0 0.0
    %745 = vmatpush1.msra.mxu0 %v569
    %746 = vmatprep.subr.mxu0 0.0
    %747 = vmatpush1.msra.mxu0 %v570
    %748 = vmatprep.subr.mxu0 0.0
    %749 = vmatpush1.msra.mxu0 %v571
    %750 = vmatprep.subr.mxu0 0.0
    %751 = vmatpush1.msra.mxu0 %v572
    %752 = vmatprep.subr.mxu0 0.0
    %753 = vmatpush1.msra.mxu0 %v573
    %754 = vmatprep.subr.mxu0 0.0
    %755 = vmatpush1.msra.mxu0 %v574
    %756 = vmatprep.subr.mxu0 0.0
    %757 = vmatpush1.msra.mxu0 %v575
    %758 = vmatprep.subr.mxu0 0.0
    %759 = vmatpush1.msra.mxu0 %v576
    %760 = vmatprep.subr.mxu0 0.0
    %761 = vmatpush1.msra.mxu0 %v577
    %762 = vmatprep.subr.mxu0 0.0
    %763 = vmatpush1.msra.mxu0 %v578
    %764 = vmatprep.subr.mxu0 0.0
    %765 = vmatpush1.msra.mxu0 %v579
    %766 = vmatprep.subr.mxu0 0.0
    %767 = vmatpush1.msra.mxu0 %v580
    %768 = vmatprep.subr.mxu0 0.0
    %769 = vmatpush1.msra.mxu0 %v581
    %770 = vmatprep.subr.mxu0 0.0
    %771 = vmatpush1.msra.mxu0 %v582
    %772 = vmatprep.subr.mxu0 0.0
    %773 = vmatpush1.msra.mxu0 %v583
    %774 = vmatprep.subr.mxu0 0.0
    %775 = vmatpush1.msra.mxu0 %v584
    %776 = vmatprep.subr.mxu0 0.0
    %777 = vmatpush1.msra.mxu0 %v585
    %778 = vmatprep.subr.mxu0 0.0
    %779 = vmatpush1.msra.mxu0 %v586
    %780 = vmatprep.subr.mxu0 0.0
    %781 = vmatpush1.msra.mxu0 %v587
    %782 = vmatprep.subr.mxu0 0.0
    %783 = vmatpush1.msra.mxu0 %v588
    %784 = vmatprep.subr.mxu0 0.0
    %785 = vmatpush1.msra.mxu0 %v589
    %786 = vmatprep.subr.mxu0 0.0
    %787 = vmatpush1.msra.mxu0 %v590
    %788 = vmatprep.subr.mxu0 0.0
    %789 = vmatpush1.msra.mxu0 %v591
    %790 = vmatprep.subr.mxu0 0.0
    %791 = vmatpush1.msra.mxu0 %v592
    %792 = vmatprep.subr.mxu0 0.0
    %793 = vmatpush1.msra.mxu0 %v593
    %794 = vmatprep.subr.mxu0 0.0
    %795 = vmatpush1.msra.mxu0 %v594
    %796 = vmatprep.subr.mxu0 0.0
    %797 = vmatpush1.msra.mxu0 %v595
    %798 = vmatprep.subr.mxu0 0.0
    %799 = vmatpush1.msra.mxu0 %v596
    %800 = vmatprep.subr.mxu0 0.0
    %801 = vmatpush1.msra.mxu0 %v597
    %802 = vmatprep.subr.mxu0 0.0
    %803 = vmatpush1.msra.mxu0 %v598
    %804 = vmatprep.mubr.f32.mxu0 %v530
    %805 = vmatmul.mubr.f32.gmra.mrb[0].mxu0 %v529
    %v806 = vpop.f32.mrb[0].mxu0
    %v807 = vadd.f32 %v737, %v806
    %v808 = vpop.f32.mrb[0].mxu0
    %809 = vdwg.mxu0
    %810 = vmatprep.subr.mxu0 0.0
    %811 = vmatpush1.msra.mxu0 %v599
    %812 = vmatprep.subr.mxu0 0.0
    %813 = vmatpush1.msra.mxu0 %v600
    %814 = vmatprep.subr.mxu0 0.0
    %815 = vmatpush1.msra.mxu0 %v601
    %816 = vmatprep.subr.mxu0 0.0
    %817 = vmatpush1.msra.mxu0 %v602
    %818 = vmatprep.subr.mxu0 0.0
    %819 = vmatpush1.msra.mxu0 %v603
    %820 = vmatprep.subr.mxu0 0.0
    %821 = vmatpush1.msra.mxu0 %v604
    %822 = vmatprep.subr.mxu0 0.0
    %823 = vmatpush1.msra.mxu0 %v605
    %824 = vmatprep.subr.mxu0 0.0
    %825 = vmatpush1.msra.mxu0 %v606
    %826 = vmatprep.subr.mxu0 0.0
    %827 = vmatpush1.msra.mxu0 %v607
    %828 = vmatprep.subr.mxu0 0.0
    %829 = vmatpush1.msra.mxu0 %v608
    %830 = vmatprep.subr.mxu0 0.0
    %831 = vmatpush1.msra.mxu0 %v609
    %832 = vmatprep.subr.mxu0 0.0
    %833 = vmatpush1.msra.mxu0 %v610
    %834 = vmatprep.subr.mxu0 0.0
    %835 = vmatpush1.msra.mxu0 %v611
    %836 = vmatprep.subr.mxu0 0.0
    %837 = vmatpush1.msra.mxu0 %v612
    %838 = vmatprep.subr.mxu0 0.0
    %839 = vmatpush1.msra.mxu0 %v613
    %840 = vmatprep.subr.mxu0 0.0
    %841 = vmatpush1.msra.mxu0 %v614
    %842 = vmatprep.subr.mxu0 0.0
    %843 = vmatpush1.msra.mxu0 %v615
    %844 = vmatprep.subr.mxu0 0.0
    %845 = vmatpush1.msra.mxu0 %v616
    %846 = vmatprep.subr.mxu0 0.0
    %847 = vmatpush1.msra.mxu0 %v617
    %848 = vmatprep.subr.mxu0 0.0
    %849 = vmatpush1.msra.mxu0 %v618
    %850 = vmatprep.subr.mxu0 0.0
    %851 = vmatpush1.msra.mxu0 %v619
    %852 = vmatprep.subr.mxu0 0.0
    %853 = vmatpush1.msra.mxu0 %v620
    %854 = vmatprep.subr.mxu0 0.0
    %855 = vmatpush1.msra.mxu0 %v621
    %856 = vmatprep.subr.mxu0 0.0
    %857 = vmatpush1.msra.mxu0 %v622
    %858 = vmatprep.subr.mxu0 0.0
    %859 = vmatpush1.msra.mxu0 %v623
    %860 = vmatprep.subr.mxu0 0.0
    %861 = vmatpush1.msra.mxu0 %v624
    %862 = vmatprep.subr.mxu0 0.0
    %863 = vmatpush1.msra.mxu0 %v625
    %864 = vmatprep.subr.mxu0 0.0
    %865 = vmatpush1.msra.mxu0 %v626
    %866 = vmatprep.subr.mxu0 0.0
    %867 = vmatpush1.msra.mxu0 %v627
    %868 = vmatprep.subr.mxu0 0.0
    %869 = vmatpush1.msra.mxu0 %v628
    %870 = vmatprep.subr.mxu0 0.0
    %871 = vmatpush1.msra.mxu0 %v629
    %872 = vmatprep.subr.mxu0 0.0
    %873 = vmatpush1.msra.mxu0 %v630
    %874 = vmatprep.mubr.f32.mxu0 %v532
    %875 = vmatmul.mubr.f32.gmra.mrb[0].mxu0 %v531
    %v876 = vpop.f32.mrb[0].mxu0
    %v877 = vadd.f32 %v807, %v876
    %v878 = vpop.f32.mrb[0].mxu0
    %879 = vdwg.mxu0
    %880 = vmatprep.subr.mxu0 0.0
    %881 = vmatpush1.msra.mxu0 %v631
    %882 = vmatprep.subr.mxu0 0.0
    %883 = vmatpush1.msra.mxu0 %v632
    %884 = vmatprep.subr.mxu0 0.0
    %885 = vmatpush1.msra.mxu0 %v633
    %886 = vmatprep.subr.mxu0 0.0
    %887 = vmatpush1.msra.mxu0 %v634
    %888 = vmatprep.subr.mxu0 0.0
    %889 = vmatpush1.msra.mxu0 %v635
    %890 = vmatprep.subr.mxu0 0.0
    %891 = vmatpush1.msra.mxu0 %v636
    %892 = vmatprep.subr.mxu0 0.0
    %893 = vmatpush1.msra.mxu0 %v637
    %894 = vmatprep.subr.mxu0 0.0
    %895 = vmatpush1.msra.mxu0 %v638
    %896 = vmatprep.subr.mxu0 0.0
    %897 = vmatpush1.msra.mxu0 %v639
    %898 = vmatprep.subr.mxu0 0.0
    %899 = vmatpush1.msra.mxu0 %v640
    %900 = vmatprep.subr.mxu0 0.0
    %901 = vmatpush1.msra.mxu0 %v641
    %902 = vmatprep.subr.mxu0 0.0
    %903 = vmatpush1.msra.mxu0 %v642
    %904 = vmatprep.subr.mxu0 0.0
    %905 = vmatpush1.msra.mxu0 %v643
    %906 = vmatprep.subr.mxu0 0.0
    %907 = vmatpush1.msra.mxu0 %v644
    %908 = vmatprep.subr.mxu0 0.0
    %909 = vmatpush1.msra.mxu0 %v645
    %910 = vmatprep.subr.mxu0 0.0
    %911 = vmatpush1.msra.mxu0 %v646
    %912 = vmatprep.subr.mxu0 0.0
    %913 = vmatpush1.msra.mxu0 %v647
    %914 = vmatprep.subr.mxu0 0.0
    %915 = vmatpush1.msra.mxu0 %v648
    %916 = vmatprep.subr.mxu0 0.0
    %917 = vmatpush1.msra.mxu0 %v649
    %918 = vmatprep.subr.mxu0 0.0
    %919 = vmatpush1.msra.mxu0 %v650
    %920 = vmatprep.subr.mxu0 0.0
    %921 = vmatpush1.msra.mxu0 %v651
    %922 = vmatprep.subr.mxu0 0.0
    %923 = vmatpush1.msra.mxu0 %v652
    %924 = vmatprep.subr.mxu0 0.0
    %925 = vmatpush1.msra.mxu0 %v653
    %926 = vmatprep.subr.mxu0 0.0
    %927 = vmatpush1.msra.mxu0 %v654
    %928 = vmatprep.subr.mxu0 0.0
    %929 = vmatpush1.msra.mxu0 %v655
    %930 = vmatprep.subr.mxu0 0.0
    %931 = vmatpush1.msra.mxu0 %v656
    %932 = vmatprep.subr.mxu0 0.0
    %933 = vmatpush1.msra.mxu0 %v657
    %934 = vmatprep.subr.mxu0 0.0
    %935 = vmatpush1.msra.mxu0 %v658
    %936 = vmatprep.subr.mxu0 0.0
    %937 = vmatpush1.msra.mxu0 %v659
    %938 = vmatprep.subr.mxu0 0.0
    %939 = vmatpush1.msra.mxu0 %v660
    %940 = vmatprep.subr.mxu0 0.0
    %941 = vmatpush1.msra.mxu0 %v661
    %942 = vmatprep.subr.mxu0 0.0
    %943 = vmatpush1.msra.mxu0 %v662
    %944 = vmatprep.mubr.f32.mxu0 %v534
    %945 = vmatmul.mubr.f32.gmra.mrb[0].mxu0 %v533
    %v946 = vpop.f32.mrb[0].mxu0
    %v947 = vadd.f32 %v877, %v946
    %v948 = vpop.f32.mrb[0].mxu0
    %949 = vdwg.mxu0
    %950 = vst [vmem:[#allocation10] sm:$0xff] %v947
    // Predicated region
    $region38: #{tpu_custom_call.1} parent=1 // pred_check
      _
    $region39: #{tpu_custom_call.1} parent=1 // pred_check_branch
      %952 = sbr.rel (0) target = $region41
    $region40: #{tpu_custom_call.1} parent=1 // pred_region
      %s954 = ssub.s32 128, 128
      %955 = vsyncadd [#allocation4], %s954
      %s957 = sshll.u32 [#allocation10], 4
      %s958 = int_to_ptr.vmem [resolvable:$true] %s957
      %960 = dma.vmem_to_hbm [thread:$0]  %s958, 128, %s5, [#allocation4]
    $region41: #{tpu_custom_call.1} parent=1 // pred_fallthru
      _
    // Predicated region
    $region42: #{tpu_custom_call.1} parent=1 // pred_check
      _
    $region43: #{tpu_custom_call.1} parent=1 // pred_check_branch
      %962 = sbr.rel (0) target = $region45
    $region44: #{tpu_custom_call.1} parent=1 // pred_region
      %963 = dma.done [#allocation4], 128
    $region45: #{tpu_custom_call.1} parent=1 // pred_fallthru
      _
    %964 = vsyncpa [#allocation3], 1
    %965 = vsyncpa [#allocation6], 1
    %966 = vsyncpa [#allocation9], 1
    %967 = vsyncpa [#allocation4], 1

</llo_original>
